<compile_context>
chip_gen: v6e
topology: v6e:2x2x1
jax: 0.10.0
libtpu: 0.0.40
codegen_flags: <defaults>
</compile_context>

<pallas_src>
import functools

import jax
import jax.numpy as jnp
from jax.experimental import pallas as pl
from jax.experimental.pallas import tpu as pltpu


def _round_up(x: int, m: int) -> int:
    return (x + m - 1) // m * m


def _sublane_multiple(dtype) -> int:
    # packed-sublane requirement: f32 -> 8, bf16/f16 -> 16, int8/fp8 -> 32
    return {4: 8, 2: 16, 1: 32}.get(jnp.dtype(dtype).itemsize, 8)


def _vmem_limit_bytes() -> int:
    kind = ""
    try:
        kind = jax.devices()[0].device_kind.lower()
    except Exception:
        pass
    if ("v5" in kind) or ("v6" in kind):
        return 64 * 1024 * 1024        # 128 MiB physical parts: plenty of room
    return 40 * 1024 * 1024            # v7x (64 MiB physical) / unknown: conservative


def _residual_kernel(x_ref, w_ref, b_ref, o_ref, *, compute_dtype):
    """o = x @ W + b + x ; W fully resident (no column tiling)."""
    x = x_ref[...]                                           # (tr, D)
    y = jnp.dot(x.astype(compute_dtype), w_ref[...],         # W pre-cast in wrapper
                preferred_element_type=jnp.float32)          # MXU, f32 acc
    o_ref[...] = (y + b_ref[...] + x.astype(jnp.float32)).astype(o_ref.dtype)


def _residual_kernel_coltiled(x_ref, xcol_ref, w_ref, b_ref, o_ref, *, compute_dtype):
    """Column-tiled variant: x_ref is the full-width row tile (for the
    contraction), xcol_ref is the matching output-column slice of x (for the
    residual add) -- avoids dynamic lane slicing in-kernel."""
    y = jnp.dot(x_ref[...].astype(compute_dtype), w_ref[...],
                preferred_element_type=jnp.float32)
    o_ref[...] = (y + b_ref[...] + xcol_ref[...].astype(jnp.float32)).astype(o_ref.dtype)


def _choose_tiling(eff_rows, eff_d, in_itemsize, w_itemsize, sub, target_tr, budget):
    """Pick (row tile tr, output-column tile tn) that fits the VMEM budget.

    Accounting per grid step: 2x double-buffered x (full width) and out (tn),
    2x buffered W column slice + bias, plus f32 dot result / cast temporaries.
    """
    cands = [eff_d] + [t for t in (512, 256, 128) if t < eff_d and eff_d % t == 0]
    best = None
    for tn in cands:
        fixed = 2 * eff_d * tn * w_itemsize + 2 * tn * 4           # W + bias (dbl-buf)
        per_row = (2 * eff_d + 2 * tn) * in_itemsize + (eff_d + tn) * 4
        avail = budget - fixed
        if avail < per_row * sub:
            continue                                                # W slice too big
        max_tr = ((avail // per_row) // sub) * sub
        tr = max(sub, (min(target_tr, max_tr) // sub) * sub)
        if tr >= 128 or tr >= eff_rows:
            best = (tr, tn)
            break
        if best is None or tr > best[0]:
            best = (tr, tn)
    if best is None:
        # TODO(synk): even the smallest W column slice exceeds the budget at
        # the minimal row tile; proceed and accept possible spilling.
        best = (sub, cands[-1])
    tr, tn = best

    if eff_rows <= tr:
        if eff_rows >= 4 * sub:
            # keep >= 2 row tiles so the v7x megacore split has work
            tr = _round_up(-(-eff_rows // 2), sub)
        else:
            tr = eff_rows            # block == full dim: always a legal shape
    return tr, tn


def residual_apply(x, w, b, *, target_rows_per_tile=1024, compute_dtype=None):
    """x: (B, N, D); w: (D, D); b: (D,). Returns fn(x) + x with fn = Linear."""
    B, N, D = x.shape
    rows = B * N
    in_dtype = x.dtype
    compute_dtype = jnp.dtype(compute_dtype or in_dtype)

    # ---- small-D lane-dense repack (pure reshape of x, no padding copies) ----
    if D <= 64 and 128 % D == 0 and rows % (128 // D) == 0:
        r = 128 // D
        eff_rows, eff_d = rows // r, 128
        x2d = x.reshape(eff_rows, eff_d)                       # contiguous reshape
        w_eff = jnp.kron(jnp.eye(r, dtype=w.dtype), w)         # block-diag (128,128)
        b_eff = jnp.tile(b, r)
    else:
        eff_rows, eff_d = rows, D
        x2d = x.reshape(eff_rows, eff_d)
        w_eff, b_eff = w, b

    # Cast the resident weight ONCE here (not per grid step inside the kernel).
    w_c = w_eff.astype(compute_dtype)
    b2d = b_eff.reshape(1, eff_d).astype(jnp.float32)

    in_itemsize = jnp.dtype(in_dtype).itemsize
    w_itemsize = jnp.dtype(compute_dtype).itemsize
    sub = _sublane_multiple(in_dtype)

    vmem_limit = _vmem_limit_bytes()
    budget = max(vmem_limit - 8 * 1024 * 1024, 8 * 1024 * 1024)
    tr, tn = _choose_tiling(eff_rows, eff_d, in_itemsize, w_itemsize, sub,
                            target_rows_per_tile, budget)

    grid_rows = pl.cdiv(eff_rows, tr)      # partial last block: OOB writes dropped
    grid_cols = eff_d // tn
    grid = (grid_rows, grid_cols)          # column axis innermost -> x tile reused

    x_spec = pl.BlockSpec((tr, eff_d), lambda i, j: (i, 0))    # streamed row tiles
    w_spec = pl.BlockSpec((eff_d, tn), lambda i, j: (0, j))    # (constant across i)
    b_spec = pl.BlockSpec((1, tn), lambda i, j: (0, j))
    o_spec = pl.BlockSpec((tr, tn), lambda i, j: (i, j))

    if grid_cols == 1:
        kernel = functools.partial(_residual_kernel, compute_dtype=compute_dtype)
        in_specs = [x_spec, w_spec, b_spec]
        args = (x2d, w_c, b2d)
        x_passes = 1
    else:
        kernel = functools.partial(_residual_kernel_coltiled, compute_dtype=compute_dtype)
        xcol_spec = pl.BlockSpec((tr, tn), lambda i, j: (i, j))
        in_specs = [x_spec, xcol_spec, w_spec, b_spec]
        args = (x2d, x2d, w_c, b2d)
        x_passes = 2

    cost = pl.CostEstimate(
        flops=2 * eff_rows * eff_d * eff_d,
        transcendentals=0,
        bytes_accessed=int((x_passes + 1) * eff_rows * eff_d * in_itemsize
                           + eff_d * eff_d * w_itemsize + eff_d * 4),
    )

    out2d = pl.pallas_call(
        kernel,
        out_shape=jax.ShapeDtypeStruct((eff_rows, eff_d), in_dtype),
        grid=grid,
        in_specs=in_specs,
        out_specs=o_spec,
        compiler_params=pltpu.CompilerParams(
            dimension_semantics=("parallel", "parallel"),
            vmem_limit_bytes=vmem_limit,
        ),
        cost_estimate=cost,
    )(*args)

    return out2d.reshape(B, N, D)


if __name__ == "__main__":
    key = jax.random.PRNGKey(0)
    kx, kw, kb = jax.random.split(key, 3)

    B, N, D = 2, 8, 32                 # batch=2, seq=8, hidden=32
    x = jax.random.normal(kx, (B, N, D), dtype=jnp.float32)
    # Deterministic "fn" parameters (Linear D -> D), synthetic init.
    w = jax.random.normal(kw, (D, D), dtype=jnp.float32) * 0.05
    b = jax.random.normal(kb, (D,), dtype=jnp.float32) * 0.01

    # f32 compute path (tight tolerance on all generations, incl. v5e).
    # On v6e/v7x pass compute_dtype=jnp.bfloat16 to halve matmul-operand width.
    out = residual_apply(x, w, b)
    out = jax.block_until_ready(out)

    # Reference check in plain JAX: fn(x) + x
    ref = x @ w + b + x
    assert out.shape == (B, N, D)
    assert jnp.allclose(out, ref, atol=1e-5, rtol=1e-5), "mismatch vs reference"

    print("KERNEL_OK")
</pallas_src>

<mosaic_0001>
module attributes {stable_mosaic.version = 11 : i64} {
  func.func @_residual_kernel(%arg0: i32, %arg1: i32, %arg2: memref<4x128xf32, #tpu.memory_space<vmem>>, %arg3: memref<128x128xf32, #tpu.memory_space<vmem>>, %arg4: memref<1x128xf32, #tpu.memory_space<vmem>>, %arg5: memref<4x128xf32, #tpu.memory_space<vmem>>) attributes {dimension_semantics = [#tpu.dimension_semantics<parallel>, #tpu.dimension_semantics<parallel>], iteration_bounds = array<i64: 1, 1>, scalar_prefetch = 0 : i64, scratch_operands = 0 : i64, tpu.core_type = #tpu.core_type<tc>, window_params = [{transform_indices = @transform_0, window_bounds = array<i64: 4, 128>}, {transform_indices = @transform_1, window_bounds = array<i64: 128, 128>}, {transform_indices = @transform_2, window_bounds = array<i64: 1, 128>}, {transform_indices = @transform_3, window_bounds = array<i64: 4, 128>}]} {
    %c0 = arith.constant 0 : index
    %c0_0 = arith.constant 0 : index
    %0 = vector.load %arg2[%c0, %c0_0] : memref<4x128xf32, #tpu.memory_space<vmem>>, vector<4x128xf32>
    %c0_1 = arith.constant 0 : index
    %c0_2 = arith.constant 0 : index
    %1 = vector.load %arg3[%c0_1, %c0_2] : memref<128x128xf32, #tpu.memory_space<vmem>>, vector<128x128xf32>
    %cst = arith.constant dense<0.000000e+00> : vector<4x128xf32>
    %2 = tpu.matmul %0, %1, %cst {dimension_numbers = #tpu.dot_dimension_numbers<[1], [0], [0], [1], [0, 0, 1, 1], [], []>} : vector<4x128xf32>, vector<128x128xf32>, vector<4x128xf32> -> vector<4x128xf32>
    %c0_3 = arith.constant 0 : index
    %c0_4 = arith.constant 0 : index
    %3 = vector.load %arg4[%c0_3, %c0_4] : memref<1x128xf32, #tpu.memory_space<vmem>>, vector<1x128xf32>
    %4 = vector.broadcast %3 : vector<1x128xf32> to vector<4x128xf32>
    %5 = arith.addf %2, %4 : vector<4x128xf32>
    %6 = arith.addf %5, %0 : vector<4x128xf32>
    %c0_5 = arith.constant 0 : index
    %c0_6 = arith.constant 0 : index
    %7 = vector.load %arg5[%c0_5, %c0_6] : memref<4x128xf32, #tpu.memory_space<vmem>>, vector<4x128xf32>
    tpu.vector_store %arg5[%c0_5, %c0_6], %6 {strides = array<i32>} : memref<4x128xf32, #tpu.memory_space<vmem>>, vector<4x128xf32>,
    return
  }
  func.func @transform_0(%arg0: i32, %arg1: i32) -> (i32, i32) {
    %c0_i32 = arith.constant 0 : i32
    %c0_i32_0 = arith.constant 0 : i32
    return %arg0, %c0_i32 : i32, i32
  }
  func.func @transform_1(%arg0: i32, %arg1: i32) -> (i32, i32) {
    %c0_i32 = arith.constant 0 : i32
    %c0_i32_0 = arith.constant 0 : i32
    return %c0_i32, %arg1 : i32, i32
  }
  func.func @transform_2(%arg0: i32, %arg1: i32) -> (i32, i32) {
    %c0_i32 = arith.constant 0 : i32
    %c0_i32_0 = arith.constant 0 : i32
    return %c0_i32, %arg1 : i32, i32
  }
  func.func @transform_3(%arg0: i32, %arg1: i32) -> (i32, i32) {
    %c0_i32 = arith.constant 0 : i32
    return %arg0, %arg1 : i32, i32
  }
}

</mosaic_0001>

<llo_original>
// kernel: tpu_custom_call.1
$region0: #{tpu_custom_call.1}
  #allocation0 [shape = 'u32[]', space=smem, size = 0x4, offset = 0x4, fixed_abs, tag = 'smem constant byte address 0x4 - core index']
  #allocation1 [shape = 'u32[144,128]{1,0:T(1,128)}', space=vmem, size = 0x12000, scoped, tag = 'internal scratch']
  %s0 = inlined_call_operand.hbm [shape: f32[4,128], index: 0, kind: input, shape index: {}]
  %s1 = inlined_call_operand.hbm [shape: f32[128,128], index: 1, kind: input, shape index: {}]
  %s2 = inlined_call_operand.vmem [shape: f32[1,128], index: 2, kind: input, shape index: {}]
  %s3 = inlined_call_operand.hbm [shape: f32[4,128], index: 3, kind: output, shape index: {}]
  %s4 = sld [smem:[#allocation0]]
  $region30: #{tpu_custom_call.1} parent=0
    _
  %s6 = ssub.s32 1, %s4
  %s7 = scalar_select 0, %s6, %s4
  $region1: #{tpu_custom_call.1} parent=0
    #allocation2 [shape = 'u8[2048]{0}', space=vmem, size = 0x800, scoped, tag = 'input window, operand 0, single buffered']
    #allocation3 [shape = 's32[1]{0}', space=sflag, size = 0x4, scoped, tag = 'scoped memory for tpu_custom_call.1']
    #allocation4 [shape = 's32[1]{0}', space=sflag, size = 0x4, scoped, tag = 'scoped memory for tpu_custom_call.1']
    #allocation5 [shape = 'u8[65536]{0}', space=vmem, size = 0x10000, scoped, tag = 'input window, operand 1, single buffered']
    #allocation6 [shape = 's32[1]{0}', space=sflag, size = 0x4, scoped, tag = 'scoped memory for tpu_custom_call.1']
    #allocation7 [shape = 'u8[2048]{0}', space=vmem, size = 0x800, scoped, tag = 'output window, operand 0, single buffered']
    %8 = vsyncpa [#allocation3], 0
    %9 = vsyncpa [#allocation6], 0
    %10 = vsyncpa [#allocation4], 0
    // Predicated region
    $region2: #{tpu_custom_call.1} parent=1 // pred_check
      _
    $region3: #{tpu_custom_call.1} parent=1 // pred_check_branch
      %12 = sbr.rel (0) target = $region5
    $region4: #{tpu_custom_call.1} parent=1 // pred_region
      %s14 = ssub.s32 64, 64
      %15 = vsyncadd [#allocation3], %s14
      %s17 = sshll.u32 [#allocation2], 4
      %s18 = int_to_ptr.vmem [resolvable:$true] %s17
      %20 = dma.hbm_to_vmem [thread:$0]  %s0, 64, %s18, [#allocation3]
    $region5: #{tpu_custom_call.1} parent=1 // pred_fallthru
      _
    // Predicated region
    $region6: #{tpu_custom_call.1} parent=1 // pred_check
      _
    $region7: #{tpu_custom_call.1} parent=1 // pred_check_branch
      %22 = sbr.rel (0) target = $region9
    $region8: #{tpu_custom_call.1} parent=1 // pred_region
      %s24 = ssub.s32 2048, 2048
      %25 = vsyncadd [#allocation6], %s24
      %s26 = sshll.u32 [#allocation5], 4
      %s27 = int_to_ptr.vmem [resolvable:$true] %s26
      %32 = dma.hbm_to_vmem [thread:$0]  %s1, 2048, %s27, [#allocation6], 128, 128, 8
    $region9: #{tpu_custom_call.1} parent=1 // pred_fallthru
      _
    // Predicated region
    $region10: #{tpu_custom_call.1} parent=1 // pred_check
      _
    $region11: #{tpu_custom_call.1} parent=1 // pred_check_branch
      %34 = sbr.rel (0) target = $region13
    $region12: #{tpu_custom_call.1} parent=1 // pred_region
      _
    $region13: #{tpu_custom_call.1} parent=1 // pred_fallthru
      _
    // Predicated region
    $region14: #{tpu_custom_call.1} parent=1 // pred_check
      _
    $region15: #{tpu_custom_call.1} parent=1 // pred_check_branch
      %36 = sbr.rel (0) target = $region17
    $region16: #{tpu_custom_call.1} parent=1 // pred_region
      %37 = dma.done [#allocation3], 64
    $region17: #{tpu_custom_call.1} parent=1 // pred_fallthru
      _
    // Predicated region
    $region18: #{tpu_custom_call.1} parent=1 // pred_check
      _
    $region19: #{tpu_custom_call.1} parent=1 // pred_check_branch
      %39 = sbr.rel (0) target = $region21
    $region20: #{tpu_custom_call.1} parent=1 // pred_region
      %40 = dma.done [#allocation6], 2048
    $region21: #{tpu_custom_call.1} parent=1 // pred_fallthru
      _
    %v41 = vld [vmem:[#allocation2] sm:$0xf]
    %v42 = vld [vmem:[#allocation5] sm:$0xff]
    %v43 = vld [vmem:[#allocation5 + $0x8] sm:$0xff]
    %v44 = vld [vmem:[#allocation5 + $0x10] sm:$0xff]
    %v45 = vld [vmem:[#allocation5 + $0x18] sm:$0xff]
    %v46 = vld [vmem:[#allocation5 + $0x20] sm:$0xff]
    %v47 = vld [vmem:[#allocation5 + $0x28] sm:$0xff]
    %v48 = vld [vmem:[#allocation5 + $0x30] sm:$0xff]
    %v49 = vld [vmem:[#allocation5 + $0x38] sm:$0xff]
    %v50 = vld [vmem:[#allocation5 + $0x40] sm:$0xff]
    %v51 = vld [vmem:[#allocation5 + $0x48] sm:$0xff]
    %v52 = vld [vmem:[#allocation5 + $0x50] sm:$0xff]
    %v53 = vld [vmem:[#allocation5 + $0x58] sm:$0xff]
    %v54 = vld [vmem:[#allocation5 + $0x60] sm:$0xff]
    %v55 = vld [vmem:[#allocation5 + $0x68] sm:$0xff]
    %v56 = vld [vmem:[#allocation5 + $0x70] sm:$0xff]
    %v57 = vld [vmem:[#allocation5 + $0x78] sm:$0xff]
    %v58 = vld [vmem:[%s2] sm:$0x1]
    %v60 = vlaneseq
    %v61 = vshrl.u32 %v60, 7
    %v62 = vsub.s32 0, %v61
    %v63 = vrot.slane %v58, %v62
    %65 = vmatprep.subr.mxu0 0.0
    %66 = vmatpush1.msra.mxu0 %v57
    %67 = vmatprep.subr.mxu0 0.0
    %68 = vmatpush1.msra.mxu0 %v56
    %69 = vmatprep.subr.mxu0 0.0
    %70 = vmatpush1.msra.mxu0 %v55
    %71 = vmatprep.subr.mxu0 0.0
    %72 = vmatpush1.msra.mxu0 %v54
    %73 = vmatprep.subr.mxu0 0.0
    %74 = vmatpush1.msra.mxu0 %v53
    %75 = vmatprep.subr.mxu0 0.0
    %76 = vmatpush1.msra.mxu0 %v52
    %77 = vmatprep.subr.mxu0 0.0
    %78 = vmatpush1.msra.mxu0 %v51
    %79 = vmatprep.subr.mxu0 0.0
    %80 = vmatpush1.msra.mxu0 %v50
    %81 = vmatprep.subr.mxu0 0.0
    %82 = vmatpush1.msra.mxu0 %v49
    %83 = vmatprep.subr.mxu0 0.0
    %84 = vmatpush1.msra.mxu0 %v48
    %85 = vmatprep.subr.mxu0 0.0
    %86 = vmatpush1.msra.mxu0 %v47
    %87 = vmatprep.subr.mxu0 0.0
    %88 = vmatpush1.msra.mxu0 %v46
    %89 = vmatprep.subr.mxu0 0.0
    %90 = vmatpush1.msra.mxu0 %v45
    %91 = vmatprep.subr.mxu0 0.0
    %92 = vmatpush1.msra.mxu0 %v44
    %93 = vmatprep.subr.mxu0 0.0
    %94 = vmatpush1.msra.mxu0 %v43
    %95 = vmatprep.subr.mxu0 0.0
    %96 = vmatpush1.msra.mxu0 %v42
    %97 = vmatprep.subr.mxu0 0.0
    %98 = vmatpush2.msra.mxu0 0.0
    %99 = vmatprep.subr.mxu0 0.0
    %100 = vmatpush2.msra.mxu0 0.0
    %101 = vmatprep.subr.mxu0 0.0
    %102 = vmatpush2.msra.mxu0 0.0
    %103 = vmatprep.subr.mxu0 0.0
    %104 = vmatpush2.msra.mxu0 0.0
    %105 = vmatprep.subr.mxu0 0.0
    %106 = vmatpush2.msra.mxu0 0.0
    %107 = vmatprep.subr.mxu0 0.0
    %108 = vmatpush2.msra.mxu0 0.0
    %109 = vmatprep.subr.mxu0 0.0
    %110 = vmatpush2.msra.mxu0 0.0
    %111 = vmatprep.subr.mxu0 0.0
    %112 = vmatpush2.msra.mxu0 0.0
    %113 = vmatprep.subr.mxu0 0.0
    %114 = vmatpush2.msra.mxu0 0.0
    %115 = vmatprep.subr.mxu0 0.0
    %116 = vmatpush2.msra.mxu0 0.0
    %117 = vmatprep.subr.mxu0 0.0
    %118 = vmatpush2.msra.mxu0 0.0
    %119 = vmatprep.subr.mxu0 0.0
    %120 = vmatpush2.msra.mxu0 0.0
    %121 = vmatprep.subr.mxu0 0.0
    %122 = vmatpush2.msra.mxu0 0.0
    %123 = vmatprep.subr.mxu0 0.0
    %124 = vmatpush2.msra.mxu0 0.0
    %125 = vmatprep.subr.mxu0 0.0
    %126 = vmatpush2.msra.mxu0 0.0
    %127 = vmatprep.subr.mxu0 0.0
    %128 = vmatpush2.msra.mxu0 0.0
    %129 = vmatprep.mubr.f32.mxu0 0.0
    %130 = vmatmul.mubr.f32.gmra.mxu0 %v41
    %v131 = vpop.f32.mrf.mxu0
    %v132 = vadd.f32 %v63, %v131
    %v133 = vpop.f32.mrf.mxu0
    %134 = vdwg.mxu0
    %v135 = vadd.f32 %v132, %v41
    %136 = vst [vmem:[#allocation7] sm:$0xf] %v135
    // Predicated region
    $region22: #{tpu_custom_call.1} parent=1 // pred_check
      _
    $region23: #{tpu_custom_call.1} parent=1 // pred_check_branch
      %138 = sbr.rel (0) target = $region25
    $region24: #{tpu_custom_call.1} parent=1 // pred_region
      %s140 = ssub.s32 64, 64
      %141 = vsyncadd [#allocation4], %s140
      %s143 = sshll.u32 [#allocation7], 4
      %s144 = int_to_ptr.vmem [resolvable:$true] %s143
      %146 = dma.vmem_to_hbm [thread:$0]  %s144, 64, %s3, [#allocation4]
    $region25: #{tpu_custom_call.1} parent=1 // pred_fallthru
      _
    // Predicated region
    $region26: #{tpu_custom_call.1} parent=1 // pred_check
      _
    $region27: #{tpu_custom_call.1} parent=1 // pred_check_branch
      %148 = sbr.rel (0) target = $region29
    $region28: #{tpu_custom_call.1} parent=1 // pred_region
      %149 = dma.done [#allocation4], 64
    $region29: #{tpu_custom_call.1} parent=1 // pred_fallthru
      _
    %150 = vsyncpa [#allocation3], 1
    %151 = vsyncpa [#allocation6], 1
    %152 = vsyncpa [#allocation4], 1

</llo_original>
